<compile_context>
chip_gen: v5e
topology: v5e:2x2
jax: 0.10.0
libtpu: 0.0.40
codegen_flags: <defaults>
</compile_context>

<pallas_src>
import functools

import jax
import jax.numpy as jnp
from jax.experimental import pallas as pl
from jax.experimental.pallas import tpu as pltpu


# ----------------------------------------------------------------------------
# helpers
# ----------------------------------------------------------------------------
def _round_up(x: int, m: int) -> int:
    return (x + m - 1) // m * m


def _batch_tile(batch: int):
    """Pick (tm, padded_batch): full batch as one tile when small, else 256."""
    b_pad = _round_up(batch, 8)
    if b_pad <= 512:
        return b_pad, b_pad
    tm = 256
    return tm, _round_up(batch, tm)


def _pick_tile(padded_dim: int, candidates):
    for c in candidates:
        if padded_dim % c == 0:
            return c
    return padded_dim


def _const_block(shape):
    """BlockSpec whose block never changes across the 1-D batch grid."""
    return pl.BlockSpec(shape, lambda i: (0,) * len(shape))


# ----------------------------------------------------------------------------
# Path 1: whole MLP fused into a single kernel (weights resident in VMEM)
# ----------------------------------------------------------------------------
def _fused_mlp_kernel(*refs, n_layers_total: int, compute_dtype):
    # refs = (x_ref, w0, b0, w1, b1, ..., w_{L-1}, b_{L-1}, o_ref)
    x_ref = refs[0]
    o_ref = refs[-1]
    wb_refs = refs[1:-1]

    h = x_ref[...].astype(jnp.float32)            # (tm, in_pad)
    for l in range(n_layers_total):               # static, fully unrolled
        w = wb_refs[2 * l][...]                   # (fi_pad, fo_pad) bf16
        b = wb_refs[2 * l + 1][...]               # (1, fo_pad) f32
        acc = jnp.dot(h.astype(compute_dtype), w,
                      preferred_element_type=jnp.float32)
        acc = acc + b
        if l != n_layers_total - 1:
            acc = jnp.maximum(acc, 0.0)
        h = acc
    o_ref[...] = h.astype(o_ref.dtype)


def mlp_forward_fused(params, x, *, compute_dtype=jnp.bfloat16):
    batch, in_dim = x.shape
    out_dim = params[-1][0].shape[1]
    n_layers_total = len(params)

    tm, b_pad = _batch_tile(batch)
    in_pad = _round_up(in_dim, 128)
    out_pad = _round_up(out_dim, 128)

    # Zero-pad input (padded weight rows / bias entries are zero => exact).
    x_p = jnp.zeros((b_pad, in_pad), x.dtype).at[:batch, :in_dim].set(x)

    flat_wb = []
    in_specs = [pl.BlockSpec((tm, in_pad), lambda i: (i, 0))]
    for (w, b) in params:
        fi, fo = w.shape
        fi_p, fo_p = _round_up(fi, 128), _round_up(fo, 128)
        w_p = jnp.zeros((fi_p, fo_p), compute_dtype).at[:fi, :fo].set(
            w.astype(compute_dtype))
        b_p = jnp.zeros((1, fo_p), jnp.float32).at[0, :fo].set(
            b.astype(jnp.float32))
        flat_wb += [w_p, b_p]
        in_specs.append(_const_block((fi_p, fo_p)))
        in_specs.append(_const_block((1, fo_p)))

    kernel = functools.partial(
        _fused_mlp_kernel,
        n_layers_total=n_layers_total,
        compute_dtype=compute_dtype,
    )

    out = pl.pallas_call(
        kernel,
        out_shape=jax.ShapeDtypeStruct((b_pad, out_pad), jnp.float32),
        grid_spec=pltpu.PrefetchScalarGridSpec(
            num_scalar_prefetch=0,
            grid=(b_pad // tm,),
            in_specs=in_specs,
            out_specs=pl.BlockSpec((tm, out_pad), lambda i: (i, 0)),
        ),
        compiler_params=pltpu.CompilerParams(
            dimension_semantics=("parallel",),     # batch tiles shard across TCs
            vmem_limit_bytes=32 * 1024 * 1024,     # safe on v5e/v6e/v7x
        ),
    )(x_p, *flat_wb)
    return out[:batch, :out_dim]


# ----------------------------------------------------------------------------
# Path 2: tiled per-layer linear (fallback when weights don't fit VMEM)
# ----------------------------------------------------------------------------
def _tiled_linear_kernel(x_ref, w_ref, b_ref, o_ref, acc_ref, *, apply_relu: bool):
    k = pl.program_id(2)

    @pl.when(k == 0)
    def _():
        acc_ref[...] = jnp.zeros_like(acc_ref)

    acc_ref[...] += jnp.dot(x_ref[...], w_ref[...],
                            preferred_element_type=jnp.float32)

    @pl.when(k == pl.num_programs(2) - 1)
    def _():
        out = acc_ref[...] + b_ref[...]           # bias only once, at finalize
        if apply_relu:
            out = jnp.maximum(out, 0.0)
        o_ref[...] = out.astype(o_ref.dtype)


def pallas_tiled_linear(x, w, b, *, apply_relu: bool, out_dtype):
    """x:[B_pad,In_pad] bf16, w:[In_pad,Out_pad] bf16, b:[1,Out_pad] f32.
    All dims already padded to lane-dense multiples."""
    b_pad, in_pad = x.shape
    _, out_pad = w.shape

    tm = b_pad if b_pad <= 512 else 256
    tn = _pick_tile(out_pad, (256, 128))
    tk = _pick_tile(in_pad, (512, 256, 128))
    grid = (b_pad // tm, out_pad // tn, in_pad // tk)   # reduction axis last

    kernel = functools.partial(_tiled_linear_kernel, apply_relu=apply_relu)
    return pl.pallas_call(
        kernel,
        out_shape=jax.ShapeDtypeStruct((b_pad, out_pad), out_dtype),
        grid_spec=pltpu.PrefetchScalarGridSpec(
            num_scalar_prefetch=0,
            grid=grid,
            in_specs=[
                pl.BlockSpec((tm, tk), lambda i, j, k: (i, k)),
                pl.BlockSpec((tk, tn), lambda i, j, k: (k, j)),
                pl.BlockSpec((1, tn), lambda i, j, k: (0, j)),
            ],
            out_specs=pl.BlockSpec((tm, tn), lambda i, j, k: (i, j)),
            scratch_shapes=[pltpu.VMEM((tm, tn), jnp.float32)],
        ),
        compiler_params=pltpu.CompilerParams(
            dimension_semantics=("parallel", "parallel", "arbitrary"),
            vmem_limit_bytes=32 * 1024 * 1024,
        ),
    )(x, w, b)


def mlp_forward_tiled(params, x, *, compute_dtype=jnp.bfloat16):
    batch, in_dim = x.shape
    out_dim = params[-1][0].shape[1]
    n_layers_total = len(params)

    _, b_pad = _batch_tile(batch)
    in_pad = _round_up(in_dim, 128)

    h = jnp.zeros((b_pad, in_pad), compute_dtype).at[:batch, :in_dim].set(
        x.astype(compute_dtype))
    for l, (w, b) in enumerate(params):
        fi, fo = w.shape
        fi_p, fo_p = _round_up(fi, 128), _round_up(fo, 128)
        w_p = jnp.zeros((fi_p, fo_p), compute_dtype).at[:fi, :fo].set(
            w.astype(compute_dtype))
        b_p = jnp.zeros((1, fo_p), jnp.float32).at[0, :fo].set(
            b.astype(jnp.float32))
        is_last = l == n_layers_total - 1
        h = pallas_tiled_linear(
            h, w_p, b_p,
            apply_relu=not is_last,
            out_dtype=jnp.float32 if is_last else compute_dtype,
        )
    return h[:batch, :out_dim]


# ----------------------------------------------------------------------------
# Top-level forward: pick fused path if all weights fit comfortably in VMEM.
# ----------------------------------------------------------------------------
def mlp_forward(params, x, *, compute_dtype=jnp.bfloat16):
    weight_bytes = sum(
        _round_up(w.shape[0], 128) * _round_up(w.shape[1], 128) * 2
        for w, _ in params
    )
    if 2 * weight_bytes <= 16 * 1024 * 1024:      # resident weights + headroom
        return mlp_forward_fused(params, x, compute_dtype=compute_dtype)
    return mlp_forward_tiled(params, x, compute_dtype=compute_dtype)


# ----------------------------------------------------------------------------
# Params & reference
# ----------------------------------------------------------------------------
def init_mlp_params(key, in_dim: int, out_dim: int, dim: int, n_layers: int):
    """Layers: Linear(in_dim, dim), n_layers x Linear(dim, dim), Linear(dim, out_dim).
    Weights stored as [fan_in, fan_out] (== torch W.T)."""
    dims = [(in_dim, dim)] + [(dim, dim)] * n_layers + [(dim, out_dim)]
    params = []
    for (fi, fo) in dims:
        key, kw, kb = jax.random.split(key, 3)
        bound = 1.0 / jnp.sqrt(fi)
        w = jax.random.uniform(kw, (fi, fo), jnp.float32, -bound, bound)
        b = jax.random.uniform(kb, (fo,), jnp.float32, -bound, bound)
        params.append((w, b))
    return params


def mlp_reference(params, x, *, compute_dtype=jnp.bfloat16):
    """Pure-JAX reference mirroring the kernel math (bf16 MXU inputs, f32 acc)."""
    h = x.astype(jnp.float32)
    n = len(params)
    for l, (w, b) in enumerate(params):
        acc = jnp.dot(h.astype(compute_dtype), w.astype(compute_dtype),
                      preferred_element_type=jnp.float32)
        acc = acc + b.astype(jnp.float32)
        if l != n - 1:
            acc = jnp.maximum(acc, 0.0)
        h = acc
    return h


if __name__ == "__main__":
    batch, in_dim, out_dim, dim, n_layers = 8, 16, 16, 32, 2

    key = jax.random.PRNGKey(0)
    key, kx = jax.random.split(key)
    x = jax.random.normal(kx, (batch, in_dim), dtype=jnp.float32)
    params = init_mlp_params(key, in_dim, out_dim, dim, n_layers)

    # Fused single-kernel path (used for these shapes).
    y_fused = jax.block_until_ready(mlp_forward(params, x))
    # Tiled per-layer path (exercised explicitly for coverage).
    y_tiled = jax.block_until_ready(mlp_forward_tiled(params, x))

    y_ref = mlp_reference(params, x)

    assert y_fused.shape == (batch, out_dim)
    assert y_tiled.shape == (batch, out_dim)
    assert jnp.allclose(y_fused, y_ref, atol=2e-3, rtol=2e-3), (
        float(jnp.max(jnp.abs(y_fused - y_ref))))
    assert jnp.allclose(y_tiled, y_ref, atol=2e-3, rtol=2e-3), (
        float(jnp.max(jnp.abs(y_tiled - y_ref))))

    print("KERNEL_OK")
</pallas_src>

<mosaic_0001>
module attributes {stable_mosaic.version = 11 : i64} {
  func.func @_fused_mlp_kernel(%arg0: i32, %arg1: memref<8x128xf32, #tpu.memory_space<vmem>>, %arg2: memref<128x128xbf16, #tpu.memory_space<vmem>>, %arg3: memref<1x128xf32, #tpu.memory_space<vmem>>, %arg4: memref<128x128xbf16, #tpu.memory_space<vmem>>, %arg5: memref<1x128xf32, #tpu.memory_space<vmem>>, %arg6: memref<128x128xbf16, #tpu.memory_space<vmem>>, %arg7: memref<1x128xf32, #tpu.memory_space<vmem>>, %arg8: memref<128x128xbf16, #tpu.memory_space<vmem>>, %arg9: memref<1x128xf32, #tpu.memory_space<vmem>>, %arg10: memref<8x128xf32, #tpu.memory_space<vmem>>) attributes {dimension_semantics = [#tpu.dimension_semantics<parallel>], iteration_bounds = array<i64: 1>, scalar_prefetch = 0 : i64, scratch_operands = 0 : i64, tpu.core_type = #tpu.core_type<tc>, window_params = [{transform_indices = @transform_0, window_bounds = array<i64: 8, 128>}, {pipeline_mode = #tpu.pipeline_mode<synchronous>, transform_indices = @transform_1, window_bounds = array<i64: 128, 128>}, {pipeline_mode = #tpu.pipeline_mode<synchronous>, transform_indices = @transform_2, window_bounds = array<i64: 1, 128>}, {pipeline_mode = #tpu.pipeline_mode<synchronous>, transform_indices = @transform_3, window_bounds = array<i64: 128, 128>}, {pipeline_mode = #tpu.pipeline_mode<synchronous>, transform_indices = @transform_4, window_bounds = array<i64: 1, 128>}, {pipeline_mode = #tpu.pipeline_mode<synchronous>, transform_indices = @transform_5, window_bounds = array<i64: 128, 128>}, {pipeline_mode = #tpu.pipeline_mode<synchronous>, transform_indices = @transform_6, window_bounds = array<i64: 1, 128>}, {pipeline_mode = #tpu.pipeline_mode<synchronous>, transform_indices = @transform_7, window_bounds = array<i64: 128, 128>}, {pipeline_mode = #tpu.pipeline_mode<synchronous>, transform_indices = @transform_8, window_bounds = array<i64: 1, 128>}, {transform_indices = @transform_9, window_bounds = array<i64: 8, 128>}]} {
    %c0 = arith.constant 0 : index
    %c0_0 = arith.constant 0 : index
    %0 = vector.load %arg1[%c0, %c0_0] : memref<8x128xf32, #tpu.memory_space<vmem>>, vector<8x128xf32>
    %c0_1 = arith.constant 0 : index
    %c0_2 = arith.constant 0 : index
    %1 = vector.load %arg2[%c0_1, %c0_2] : memref<128x128xbf16, #tpu.memory_space<vmem>>, vector<128x128xbf16>
    %c0_3 = arith.constant 0 : index
    %c0_4 = arith.constant 0 : index
    %2 = vector.load %arg3[%c0_3, %c0_4] : memref<1x128xf32, #tpu.memory_space<vmem>>, vector<1x128xf32>
    %3 = arith.truncf %0 : vector<8x128xf32> to vector<8x128xbf16>
    %cst = arith.constant dense<0.000000e+00> : vector<8x128xf32>
    %4 = tpu.matmul %3, %1, %cst {dimension_numbers = #tpu.dot_dimension_numbers<[1], [0], [0], [1], [0, 0, 1, 1], [], []>} : vector<8x128xbf16>, vector<128x128xbf16>, vector<8x128xf32> -> vector<8x128xf32>
    %5 = vector.broadcast %2 : vector<1x128xf32> to vector<8x128xf32>
    %6 = arith.addf %4, %5 : vector<8x128xf32>
    %cst_5 = arith.constant 0.000000e+00 : f32
    %7 = vector.broadcast %cst_5 : f32 to vector<8x128xf32>
    %8 = arith.maximumf %6, %7 : vector<8x128xf32>
    %c0_6 = arith.constant 0 : index
    %c0_7 = arith.constant 0 : index
    %9 = vector.load %arg4[%c0_6, %c0_7] : memref<128x128xbf16, #tpu.memory_space<vmem>>, vector<128x128xbf16>
    %c0_8 = arith.constant 0 : index
    %c0_9 = arith.constant 0 : index
    %10 = vector.load %arg5[%c0_8, %c0_9] : memref<1x128xf32, #tpu.memory_space<vmem>>, vector<1x128xf32>
    %11 = arith.truncf %8 : vector<8x128xf32> to vector<8x128xbf16>
    %cst_10 = arith.constant dense<0.000000e+00> : vector<8x128xf32>
    %12 = tpu.matmul %11, %9, %cst_10 {dimension_numbers = #tpu.dot_dimension_numbers<[1], [0], [0], [1], [0, 0, 1, 1], [], []>} : vector<8x128xbf16>, vector<128x128xbf16>, vector<8x128xf32> -> vector<8x128xf32>
    %13 = vector.broadcast %10 : vector<1x128xf32> to vector<8x128xf32>
    %14 = arith.addf %12, %13 : vector<8x128xf32>
    %cst_11 = arith.constant 0.000000e+00 : f32
    %15 = vector.broadcast %cst_11 : f32 to vector<8x128xf32>
    %16 = arith.maximumf %14, %15 : vector<8x128xf32>
    %c0_12 = arith.constant 0 : index
    %c0_13 = arith.constant 0 : index
    %17 = vector.load %arg6[%c0_12, %c0_13] : memref<128x128xbf16, #tpu.memory_space<vmem>>, vector<128x128xbf16>
    %c0_14 = arith.constant 0 : index
    %c0_15 = arith.constant 0 : index
    %18 = vector.load %arg7[%c0_14, %c0_15] : memref<1x128xf32, #tpu.memory_space<vmem>>, vector<1x128xf32>
    %19 = arith.truncf %16 : vector<8x128xf32> to vector<8x128xbf16>
    %cst_16 = arith.constant dense<0.000000e+00> : vector<8x128xf32>
    %20 = tpu.matmul %19, %17, %cst_16 {dimension_numbers = #tpu.dot_dimension_numbers<[1], [0], [0], [1], [0, 0, 1, 1], [], []>} : vector<8x128xbf16>, vector<128x128xbf16>, vector<8x128xf32> -> vector<8x128xf32>
    %21 = vector.broadcast %18 : vector<1x128xf32> to vector<8x128xf32>
    %22 = arith.addf %20, %21 : vector<8x128xf32>
    %cst_17 = arith.constant 0.000000e+00 : f32
    %23 = vector.broadcast %cst_17 : f32 to vector<8x128xf32>
    %24 = arith.maximumf %22, %23 : vector<8x128xf32>
    %c0_18 = arith.constant 0 : index
    %c0_19 = arith.constant 0 : index
    %25 = vector.load %arg8[%c0_18, %c0_19] : memref<128x128xbf16, #tpu.memory_space<vmem>>, vector<128x128xbf16>
    %c0_20 = arith.constant 0 : index
    %c0_21 = arith.constant 0 : index
    %26 = vector.load %arg9[%c0_20, %c0_21] : memref<1x128xf32, #tpu.memory_space<vmem>>, vector<1x128xf32>
    %27 = arith.truncf %24 : vector<8x128xf32> to vector<8x128xbf16>
    %cst_22 = arith.constant dense<0.000000e+00> : vector<8x128xf32>
    %28 = tpu.matmul %27, %25, %cst_22 {dimension_numbers = #tpu.dot_dimension_numbers<[1], [0], [0], [1], [0, 0, 1, 1], [], []>} : vector<8x128xbf16>, vector<128x128xbf16>, vector<8x128xf32> -> vector<8x128xf32>
    %29 = vector.broadcast %26 : vector<1x128xf32> to vector<8x128xf32>
    %30 = arith.addf %28, %29 : vector<8x128xf32>
    %c0_23 = arith.constant 0 : index
    %c0_24 = arith.constant 0 : index
    %31 = vector.load %arg10[%c0_23, %c0_24] : memref<8x128xf32, #tpu.memory_space<vmem>>, vector<8x128xf32>
    tpu.vector_store %arg10[%c0_23, %c0_24], %30 {strides = array<i32>} : memref<8x128xf32, #tpu.memory_space<vmem>>, vector<8x128xf32>,
    return
  }
  func.func @transform_0(%arg0: i32) -> (i32, i32) {
    %c0_i32 = arith.constant 0 : i32
    %c0_i32_0 = arith.constant 0 : i32
    return %arg0, %c0_i32 : i32, i32
  }
  func.func @transform_1(%arg0: i32) -> (i32, i32) {
    %c0_i32 = arith.constant 0 : i32
    %c0_i32_0 = arith.constant 0 : i32
    %c0_i32_1 = arith.constant 0 : i32
    return %c0_i32, %c0_i32_0 : i32, i32
  }
  func.func @transform_2(%arg0: i32) -> (i32, i32) {
    %c0_i32 = arith.constant 0 : i32
    %c0_i32_0 = arith.constant 0 : i32
    %c0_i32_1 = arith.constant 0 : i32
    return %c0_i32, %c0_i32_0 : i32, i32
  }
  func.func @transform_3(%arg0: i32) -> (i32, i32) {
    %c0_i32 = arith.constant 0 : i32
    %c0_i32_0 = arith.constant 0 : i32
    %c0_i32_1 = arith.constant 0 : i32
    return %c0_i32, %c0_i32_0 : i32, i32
  }
  func.func @transform_4(%arg0: i32) -> (i32, i32) {
    %c0_i32 = arith.constant 0 : i32
    %c0_i32_0 = arith.constant 0 : i32
    %c0_i32_1 = arith.constant 0 : i32
    return %c0_i32, %c0_i32_0 : i32, i32
  }
  func.func @transform_5(%arg0: i32) -> (i32, i32) {
    %c0_i32 = arith.constant 0 : i32
    %c0_i32_0 = arith.constant 0 : i32
    %c0_i32_1 = arith.constant 0 : i32
    return %c0_i32, %c0_i32_0 : i32, i32
  }
  func.func @transform_6(%arg0: i32) -> (i32, i32) {
    %c0_i32 = arith.constant 0 : i32
    %c0_i32_0 = arith.constant 0 : i32
    %c0_i32_1 = arith.constant 0 : i32
    return %c0_i32, %c0_i32_0 : i32, i32
  }
  func.func @transform_7(%arg0: i32) -> (i32, i32) {
    %c0_i32 = arith.constant 0 : i32
    %c0_i32_0 = arith.constant 0 : i32
    %c0_i32_1 = arith.constant 0 : i32
    return %c0_i32, %c0_i32_0 : i32, i32
  }
  func.func @transform_8(%arg0: i32) -> (i32, i32) {
    %c0_i32 = arith.constant 0 : i32
    %c0_i32_0 = arith.constant 0 : i32
    %c0_i32_1 = arith.constant 0 : i32
    return %c0_i32, %c0_i32_0 : i32, i32
  }
  func.func @transform_9(%arg0: i32) -> (i32, i32) {
    %c0_i32 = arith.constant 0 : i32
    %c0_i32_0 = arith.constant 0 : i32
    return %arg0, %c0_i32 : i32, i32
  }
}

</mosaic_0001>

<llo_original>
// kernel: tpu_custom_call.1
$region0: #{tpu_custom_call.1}
  #allocation0 [shape = 'u32[]', space=smem, size = 0x4, offset = 0x4, fixed_abs, tag = 'smem constant byte address 0x4 - core index']
  #allocation1 [shape = 'u32[72,128]{1,0:T(1,128)}', space=vmem, size = 0x9000, scoped, tag = 'internal scratch']
  %s0 = inlined_call_operand.hbm [shape: f32[8,128], index: 0, kind: input, shape index: {}]
  %s1 = inlined_call_operand.hbm [shape: bf16[128,128], index: 1, kind: input, shape index: {}]
  %s2 = inlined_call_operand.vmem [shape: f32[1,128], index: 2, kind: input, shape index: {}]
  %s3 = inlined_call_operand.hbm [shape: bf16[128,128], index: 3, kind: input, shape index: {}]
  %s4 = inlined_call_operand.vmem [shape: f32[1,128], index: 4, kind: input, shape index: {}]
  %s5 = inlined_call_operand.hbm [shape: bf16[128,128], index: 5, kind: input, shape index: {}]
  %s6 = inlined_call_operand.vmem [shape: f32[1,128], index: 6, kind: input, shape index: {}]
  %s7 = inlined_call_operand.hbm [shape: bf16[128,128], index: 7, kind: input, shape index: {}]
  %s8 = inlined_call_operand.vmem [shape: f32[1,128], index: 8, kind: input, shape index: {}]
  %s9 = inlined_call_operand.hbm [shape: f32[8,128], index: 9, kind: output, shape index: {}]
  %s10 = sld [smem:[#allocation0]]
  $region66: #{tpu_custom_call.1} parent=0
    _
  %s12 = ssub.s32 1, %s10
  %s13 = scalar_select 0, %s12, %s10
  $region1: #{tpu_custom_call.1} parent=0
    #allocation2 [shape = 'u8[4096]{0}', space=vmem, size = 0x1000, scoped, tag = 'input window, operand 0, single buffered']
    #allocation3 [shape = 's32[1]{0}', space=sflag, size = 0x4, scoped, tag = 'scoped memory for tpu_custom_call.1']
    #allocation4 [shape = 's32[1]{0}', space=sflag, size = 0x4, scoped, tag = 'scoped memory for tpu_custom_call.1']
    #allocation5 [shape = 'u8[32768]{0}', space=vmem, size = 0x8000, scoped, tag = 'input window, operand 1, single buffered']
    #allocation6 [shape = 's32[1]{0}', space=sflag, size = 0x4, scoped, tag = 'scoped memory for tpu_custom_call.1']
    #allocation7 [shape = 'u8[32768]{0}', space=vmem, size = 0x8000, scoped, tag = 'input window, operand 3, single buffered']
    #allocation8 [shape = 'u8[32768]{0}', space=vmem, size = 0x8000, scoped, tag = 'input window, operand 5, single buffered']
    #allocation9 [shape = 's32[1]{0}', space=sflag, size = 0x4, scoped, tag = 'scoped memory for tpu_custom_call.1']
    #allocation10 [shape = 'u8[32768]{0}', space=vmem, size = 0x8000, scoped, tag = 'input window, operand 7, single buffered']
    #allocation11 [shape = 'u8[4096]{0}', space=vmem, size = 0x1000, scoped, tag = 'output window, operand 0, single buffered']
    %14 = vsyncpa [#allocation3], 0
    %15 = vsyncpa [#allocation6], 0
    %16 = vsyncpa [#allocation9], 0
    %17 = vsyncpa [#allocation4], 0
    // Predicated region
    $region2: #{tpu_custom_call.1} parent=1 // pred_check
      _
    $region3: #{tpu_custom_call.1} parent=1 // pred_check_branch
      %19 = sbr.rel (0) target = $region5
    $region4: #{tpu_custom_call.1} parent=1 // pred_region
      %21 = vsyncadd [#allocation3], 0
      %s23 = sshll.u32 %s0, 4
      %s24 = int_to_ptr.hbm [resolvable:$true] %s23
      %s25 = sshll.u32 [#allocation2], 4
      %s26 = int_to_ptr.vmem [resolvable:$true] %s25
      %28 = dma.hbm_to_vmem [thread:$0]  %s24, 128, %s26, [#allocation3]
    $region5: #{tpu_custom_call.1} parent=1 // pred_fallthru
      _
    // Predicated region
    $region6: #{tpu_custom_call.1} parent=1 // pred_check
      _
    $region7: #{tpu_custom_call.1} parent=1 // pred_check_branch
      %30 = sbr.rel (0) target = $region9
    $region8: #{tpu_custom_call.1} parent=1 // pred_region
      %32 = vsyncadd [#allocation6], 0
      %s33 = sshll.u32 %s1, 4
      %s34 = int_to_ptr.hbm [resolvable:$true] %s33
      %s35 = sshll.u32 [#allocation5], 4
      %s36 = int_to_ptr.vmem [resolvable:$true] %s35
      %41 = dma.hbm_to_vmem [thread:$0]  %s34, 1024, %s36, [#allocation6], 64, 64, 4
    $region9: #{tpu_custom_call.1} parent=1 // pred_fallthru
      _
    // Predicated region
    $region10: #{tpu_custom_call.1} parent=1 // pred_check
      _
    $region11: #{tpu_custom_call.1} parent=1 // pred_check_branch
      %43 = sbr.rel (0) target = $region13
    $region12: #{tpu_custom_call.1} parent=1 // pred_region
      _
    $region13: #{tpu_custom_call.1} parent=1 // pred_fallthru
      _
    // Predicated region
    $region14: #{tpu_custom_call.1} parent=1 // pred_check
      _
    $region15: #{tpu_custom_call.1} parent=1 // pred_check_branch
      %45 = sbr.rel (0) target = $region17
    $region16: #{tpu_custom_call.1} parent=1 // pred_region
      %47 = vsyncadd [#allocation6], 0
      %s48 = sshll.u32 %s3, 4
      %s49 = int_to_ptr.hbm [resolvable:$true] %s48
      %s50 = sshll.u32 [#allocation7], 4
      %s51 = int_to_ptr.vmem [resolvable:$true] %s50
      %56 = dma.hbm_to_vmem [thread:$0]  %s49, 1024, %s51, [#allocation6], 64, 64, 4
    $region17: #{tpu_custom_call.1} parent=1 // pred_fallthru
      _
    // Predicated region
    $region18: #{tpu_custom_call.1} parent=1 // pred_check
      _
    $region19: #{tpu_custom_call.1} parent=1 // pred_check_branch
      %58 = sbr.rel (0) target = $region21
    $region20: #{tpu_custom_call.1} parent=1 // pred_region
      _
    $region21: #{tpu_custom_call.1} parent=1 // pred_fallthru
      _
    // Predicated region
    $region22: #{tpu_custom_call.1} parent=1 // pred_check
      _
    $region23: #{tpu_custom_call.1} parent=1 // pred_check_branch
      %60 = sbr.rel (0) target = $region25
    $region24: #{tpu_custom_call.1} parent=1 // pred_region
      %62 = vsyncadd [#allocation9], 0
      %s63 = sshll.u32 %s5, 4
      %s64 = int_to_ptr.hbm [resolvable:$true] %s63
      %s65 = sshll.u32 [#allocation8], 4
      %s66 = int_to_ptr.vmem [resolvable:$true] %s65
      %71 = dma.hbm_to_vmem [thread:$0]  %s64, 1024, %s66, [#allocation9], 64, 64, 4
    $region25: #{tpu_custom_call.1} parent=1 // pred_fallthru
      _
    // Predicated region
    $region26: #{tpu_custom_call.1} parent=1 // pred_check
      _
    $region27: #{tpu_custom_call.1} parent=1 // pred_check_branch
      %73 = sbr.rel (0) target = $region29
    $region28: #{tpu_custom_call.1} parent=1 // pred_region
      _
    $region29: #{tpu_custom_call.1} parent=1 // pred_fallthru
      _
    // Predicated region
    $region30: #{tpu_custom_call.1} parent=1 // pred_check
      _
    $region31: #{tpu_custom_call.1} parent=1 // pred_check_branch
      %75 = sbr.rel (0) target = $region33
    $region32: #{tpu_custom_call.1} parent=1 // pred_region
      %77 = vsyncadd [#allocation9], 0
      %s78 = sshll.u32 %s7, 4
      %s79 = int_to_ptr.hbm [resolvable:$true] %s78
      %s80 = sshll.u32 [#allocation10], 4
      %s81 = int_to_ptr.vmem [resolvable:$true] %s80
      %86 = dma.hbm_to_vmem [thread:$0]  %s79, 1024, %s81, [#allocation9], 64, 64, 4
    $region33: #{tpu_custom_call.1} parent=1 // pred_fallthru
      _
    // Predicated region
    $region34: #{tpu_custom_call.1} parent=1 // pred_check
      _
    $region35: #{tpu_custom_call.1} parent=1 // pred_check_branch
      %88 = sbr.rel (0) target = $region37
    $region36: #{tpu_custom_call.1} parent=1 // pred_region
      _
    $region37: #{tpu_custom_call.1} parent=1 // pred_fallthru
      _
    // Predicated region
    $region38: #{tpu_custom_call.1} parent=1 // pred_check
      _
    $region39: #{tpu_custom_call.1} parent=1 // pred_check_branch
      %90 = sbr.rel (0) target = $region41
    $region40: #{tpu_custom_call.1} parent=1 // pred_region
      %92 = dma.done [#allocation3], 128
    $region41: #{tpu_custom_call.1} parent=1 // pred_fallthru
      _
    // Predicated region
    $region42: #{tpu_custom_call.1} parent=1 // pred_check
      _
    $region43: #{tpu_custom_call.1} parent=1 // pred_check_branch
      %94 = sbr.rel (0) target = $region45
    $region44: #{tpu_custom_call.1} parent=1 // pred_region
      %96 = dma.done [#allocation6], 1024
    $region45: #{tpu_custom_call.1} parent=1 // pred_fallthru
      _
    // Predicated region
    $region46: #{tpu_custom_call.1} parent=1 // pred_check
      _
    $region47: #{tpu_custom_call.1} parent=1 // pred_check_branch
      %98 = sbr.rel (0) target = $region49
    $region48: #{tpu_custom_call.1} parent=1 // pred_region
      %100 = dma.done [#allocation6], 1024
    $region49: #{tpu_custom_call.1} parent=1 // pred_fallthru
      _
    // Predicated region
    $region50: #{tpu_custom_call.1} parent=1 // pred_check
      _
    $region51: #{tpu_custom_call.1} parent=1 // pred_check_branch
      %102 = sbr.rel (0) target = $region53
    $region52: #{tpu_custom_call.1} parent=1 // pred_region
      %104 = dma.done [#allocation9], 1024
    $region53: #{tpu_custom_call.1} parent=1 // pred_fallthru
      _
    // Predicated region
    $region54: #{tpu_custom_call.1} parent=1 // pred_check
      _
    $region55: #{tpu_custom_call.1} parent=1 // pred_check_branch
      %106 = sbr.rel (0) target = $region57
    $region56: #{tpu_custom_call.1} parent=1 // pred_region
      %108 = dma.done [#allocation9], 1024
    $region57: #{tpu_custom_call.1} parent=1 // pred_fallthru
      _
    %v109 = vld [vmem:[#allocation2] sm:$0xff]
    %v110 = vld [vmem:[#allocation5] sm:$0xf]
    %v111 = vld [vmem:[#allocation5 + $0x4] sm:$0xf]
    %v112 = vld [vmem:[#allocation5 + $0x8] sm:$0xf]
    %v113 = vld [vmem:[#allocation5 + $0xc] sm:$0xf]
    %v114 = vld [vmem:[#allocation5 + $0x10] sm:$0xf]
    %v115 = vld [vmem:[#allocation5 + $0x14] sm:$0xf]
    %v116 = vld [vmem:[#allocation5 + $0x18] sm:$0xf]
    %v117 = vld [vmem:[#allocation5 + $0x1c] sm:$0xf]
    %v118 = vld [vmem:[#allocation5 + $0x20] sm:$0xf]
    %v119 = vld [vmem:[#allocation5 + $0x24] sm:$0xf]
    %v120 = vld [vmem:[#allocation5 + $0x28] sm:$0xf]
    %v121 = vld [vmem:[#allocation5 + $0x2c] sm:$0xf]
    %v122 = vld [vmem:[#allocation5 + $0x30] sm:$0xf]
    %v123 = vld [vmem:[#allocation5 + $0x34] sm:$0xf]
    %v124 = vld [vmem:[#allocation5 + $0x38] sm:$0xf]
    %v125 = vld [vmem:[#allocation5 + $0x3c] sm:$0xf]
    %v126 = vld [vmem:[%s2] sm:$0x1]
    %v127 = vpack.c.bf16 %v109, %v109
    %v129 = vperm.slane %v126, 0
    %v147 = vunpack.c.l.b16 %v110
    %v148 = vunpack.c.l.b16 %v111
    %v149 = vunpack.c.l.b16 %v112
    %v150 = vunpack.c.l.b16 %v113
    %v151 = vunpack.c.l.b16 %v114
    %v152 = vunpack.c.l.b16 %v115
    %v153 = vunpack.c.l.b16 %v116
    %v154 = vunpack.c.l.b16 %v117
    %v155 = vunpack.c.l.b16 %v118
    %v156 = vunpack.c.l.b16 %v119
    %v157 = vunpack.c.l.b16 %v120
    %v158 = vunpack.c.l.b16 %v121
    %v159 = vunpack.c.l.b16 %v122
    %v160 = vunpack.c.l.b16 %v123
    %v161 = vunpack.c.l.b16 %v124
    %v162 = vunpack.c.l.b16 %v125
    %v163 = vpack.c.b16 %v148, %v147
    %v164 = vpack.c.b16 %v150, %v149
    %v165 = vpack.c.b16 %v152, %v151
    %v166 = vpack.c.b16 %v154, %v153
    %v167 = vpack.c.b16 %v156, %v155
    %v168 = vpack.c.b16 %v158, %v157
    %v169 = vpack.c.b16 %v160, %v159
    %v170 = vpack.c.b16 %v162, %v161
    %179 = vmatpush.bf16.msra.mxu0 %v170
    %180 = vmatpush.bf16.msra.mxu0 %v169
    %181 = vmatpush.bf16.msra.mxu0 %v168
    %182 = vmatpush.bf16.msra.mxu0 %v167
    %183 = vmatpush.bf16.msra.mxu0 %v166
    %184 = vmatpush.bf16.msra.mxu0 %v165
    %185 = vmatpush.bf16.msra.mxu0 %v164
    %186 = vmatpush.bf16.msra.mxu0 %v163
    %187 = vmatmul.bf16.gmra.mxu0 %v127
    %v188 = vpop.f32.mrf.mxu0
    %v189 = vadd.f32 %v129, %v188
    %v190 = vpop.f32.mrf.mxu0
    %191 = vdwg.mxu0
    %v192 = vmax.f32 %v189, 0.0
    %v193 = vld [vmem:[#allocation7] sm:$0xf]
    %v194 = vld [vmem:[#allocation7 + $0x4] sm:$0xf]
    %v195 = vld [vmem:[#allocation7 + $0x8] sm:$0xf]
    %v196 = vld [vmem:[#allocation7 + $0xc] sm:$0xf]
    %v197 = vld [vmem:[#allocation7 + $0x10] sm:$0xf]
    %v198 = vld [vmem:[#allocation7 + $0x14] sm:$0xf]
    %v199 = vld [vmem:[#allocation7 + $0x18] sm:$0xf]
    %v200 = vld [vmem:[#allocation7 + $0x1c] sm:$0xf]
    %v201 = vld [vmem:[#allocation7 + $0x20] sm:$0xf]
    %v202 = vld [vmem:[#allocation7 + $0x24] sm:$0xf]
    %v203 = vld [vmem:[#allocation7 + $0x28] sm:$0xf]
    %v204 = vld [vmem:[#allocation7 + $0x2c] sm:$0xf]
    %v205 = vld [vmem:[#allocation7 + $0x30] sm:$0xf]
    %v206 = vld [vmem:[#allocation7 + $0x34] sm:$0xf]
    %v207 = vld [vmem:[#allocation7 + $0x38] sm:$0xf]
    %v208 = vld [vmem:[#allocation7 + $0x3c] sm:$0xf]
    %v209 = vld [vmem:[%s4] sm:$0x1]
    %v210 = vpack.c.bf16 %v192, %v192
    %v212 = vperm.slane %v209, 0
    %v230 = vunpack.c.l.b16 %v193
    %v231 = vunpack.c.l.b16 %v194
    %v232 = vunpack.c.l.b16 %v195
    %v233 = vunpack.c.l.b16 %v196
    %v234 = vunpack.c.l.b16 %v197
    %v235 = vunpack.c.l.b16 %v198
    %v236 = vunpack.c.l.b16 %v199
    %v237 = vunpack.c.l.b16 %v200
    %v238 = vunpack.c.l.b16 %v201
    %v239 = vunpack.c.l.b16 %v202
    %v240 = vunpack.c.l.b16 %v203
    %v241 = vunpack.c.l.b16 %v204
    %v242 = vunpack.c.l.b16 %v205
    %v243 = vunpack.c.l.b16 %v206
    %v244 = vunpack.c.l.b16 %v207
    %v245 = vunpack.c.l.b16 %v208
    %v246 = vpack.c.b16 %v231, %v230
    %v247 = vpack.c.b16 %v233, %v232
    %v248 = vpack.c.b16 %v235, %v234
    %v249 = vpack.c.b16 %v237, %v236
    %v250 = vpack.c.b16 %v239, %v238
    %v251 = vpack.c.b16 %v241, %v240
    %v252 = vpack.c.b16 %v243, %v242
    %v253 = vpack.c.b16 %v245, %v244
    %262 = vmatpush.bf16.msra.mxu0 %v253
    %263 = vmatpush.bf16.msra.mxu0 %v252
    %264 = vmatpush.bf16.msra.mxu0 %v251
    %265 = vmatpush.bf16.msra.mxu0 %v250
    %266 = vmatpush.bf16.msra.mxu0 %v249
    %267 = vmatpush.bf16.msra.mxu0 %v248
    %268 = vmatpush.bf16.msra.mxu0 %v247
    %269 = vmatpush.bf16.msra.mxu0 %v246
    %270 = vmatmul.bf16.gmra.mxu0 %v210
    %v271 = vpop.f32.mrf.mxu0
    %v272 = vadd.f32 %v212, %v271
    %v273 = vpop.f32.mrf.mxu0
    %274 = vdwg.mxu0
    %v275 = vmax.f32 %v272, 0.0
    %v276 = vld [vmem:[#allocation8] sm:$0xf]
    %v277 = vld [vmem:[#allocation8 + $0x4] sm:$0xf]
    %v278 = vld [vmem:[#allocation8 + $0x8] sm:$0xf]
    %v279 = vld [vmem:[#allocation8 + $0xc] sm:$0xf]
    %v280 = vld [vmem:[#allocation8 + $0x10] sm:$0xf]
    %v281 = vld [vmem:[#allocation8 + $0x14] sm:$0xf]
    %v282 = vld [vmem:[#allocation8 + $0x18] sm:$0xf]
    %v283 = vld [vmem:[#allocation8 + $0x1c] sm:$0xf]
    %v284 = vld [vmem:[#allocation8 + $0x20] sm:$0xf]
    %v285 = vld [vmem:[#allocation8 + $0x24] sm:$0xf]
    %v286 = vld [vmem:[#allocation8 + $0x28] sm:$0xf]
    %v287 = vld [vmem:[#allocation8 + $0x2c] sm:$0xf]
    %v288 = vld [vmem:[#allocation8 + $0x30] sm:$0xf]
    %v289 = vld [vmem:[#allocation8 + $0x34] sm:$0xf]
    %v290 = vld [vmem:[#allocation8 + $0x38] sm:$0xf]
    %v291 = vld [vmem:[#allocation8 + $0x3c] sm:$0xf]
    %v292 = vld [vmem:[%s6] sm:$0x1]
    %v293 = vpack.c.bf16 %v275, %v275
    %v295 = vperm.slane %v292, 0
    %v313 = vunpack.c.l.b16 %v276
    %v314 = vunpack.c.l.b16 %v277
    %v315 = vunpack.c.l.b16 %v278
    %v316 = vunpack.c.l.b16 %v279
    %v317 = vunpack.c.l.b16 %v280
    %v318 = vunpack.c.l.b16 %v281
    %v319 = vunpack.c.l.b16 %v282
    %v320 = vunpack.c.l.b16 %v283
    %v321 = vunpack.c.l.b16 %v284
    %v322 = vunpack.c.l.b16 %v285
    %v323 = vunpack.c.l.b16 %v286
    %v324 = vunpack.c.l.b16 %v287
    %v325 = vunpack.c.l.b16 %v288
    %v326 = vunpack.c.l.b16 %v289
    %v327 = vunpack.c.l.b16 %v290
    %v328 = vunpack.c.l.b16 %v291
    %v329 = vpack.c.b16 %v314, %v313
    %v330 = vpack.c.b16 %v316, %v315
    %v331 = vpack.c.b16 %v318, %v317
    %v332 = vpack.c.b16 %v320, %v319
    %v333 = vpack.c.b16 %v322, %v321
    %v334 = vpack.c.b16 %v324, %v323
    %v335 = vpack.c.b16 %v326, %v325
    %v336 = vpack.c.b16 %v328, %v327
    %345 = vmatpush.bf16.msra.mxu0 %v336
    %346 = vmatpush.bf16.msra.mxu0 %v335
    %347 = vmatpush.bf16.msra.mxu0 %v334
    %348 = vmatpush.bf16.msra.mxu0 %v333
    %349 = vmatpush.bf16.msra.mxu0 %v332
    %350 = vmatpush.bf16.msra.mxu0 %v331
    %351 = vmatpush.bf16.msra.mxu0 %v330
    %352 = vmatpush.bf16.msra.mxu0 %v329
    %353 = vmatmul.bf16.gmra.mxu0 %v293
    %v354 = vpop.f32.mrf.mxu0
    %v355 = vadd.f32 %v295, %v354
    %v356 = vpop.f32.mrf.mxu0
    %357 = vdwg.mxu0
    %v358 = vmax.f32 %v355, 0.0
    %v359 = vld [vmem:[#allocation10] sm:$0xf]
    %v360 = vld [vmem:[#allocation10 + $0x4] sm:$0xf]
    %v361 = vld [vmem:[#allocation10 + $0x8] sm:$0xf]
    %v362 = vld [vmem:[#allocation10 + $0xc] sm:$0xf]
    %v363 = vld [vmem:[#allocation10 + $0x10] sm:$0xf]
    %v364 = vld [vmem:[#allocation10 + $0x14] sm:$0xf]
    %v365 = vld [vmem:[#allocation10 + $0x18] sm:$0xf]
    %v366 = vld [vmem:[#allocation10 + $0x1c] sm:$0xf]
    %v367 = vld [vmem:[#allocation10 + $0x20] sm:$0xf]
    %v368 = vld [vmem:[#allocation10 + $0x24] sm:$0xf]
    %v369 = vld [vmem:[#allocation10 + $0x28] sm:$0xf]
    %v370 = vld [vmem:[#allocation10 + $0x2c] sm:$0xf]
    %v371 = vld [vmem:[#allocation10 + $0x30] sm:$0xf]
    %v372 = vld [vmem:[#allocation10 + $0x34] sm:$0xf]
    %v373 = vld [vmem:[#allocation10 + $0x38] sm:$0xf]
    %v374 = vld [vmem:[#allocation10 + $0x3c] sm:$0xf]
    %v375 = vld [vmem:[%s8] sm:$0x1]
    %v376 = vpack.c.bf16 %v358, %v358
    %v378 = vperm.slane %v375, 0
    %v396 = vunpack.c.l.b16 %v359
    %v397 = vunpack.c.l.b16 %v360
    %v398 = vunpack.c.l.b16 %v361
    %v399 = vunpack.c.l.b16 %v362
    %v400 = vunpack.c.l.b16 %v363
    %v401 = vunpack.c.l.b16 %v364
    %v402 = vunpack.c.l.b16 %v365
    %v403 = vunpack.c.l.b16 %v366
    %v404 = vunpack.c.l.b16 %v367
    %v405 = vunpack.c.l.b16 %v368
    %v406 = vunpack.c.l.b16 %v369
    %v407 = vunpack.c.l.b16 %v370
    %v408 = vunpack.c.l.b16 %v371
    %v409 = vunpack.c.l.b16 %v372
    %v410 = vunpack.c.l.b16 %v373
    %v411 = vunpack.c.l.b16 %v374
    %v412 = vpack.c.b16 %v397, %v396
    %v413 = vpack.c.b16 %v399, %v398
    %v414 = vpack.c.b16 %v401, %v400
    %v415 = vpack.c.b16 %v403, %v402
    %v416 = vpack.c.b16 %v405, %v404
    %v417 = vpack.c.b16 %v407, %v406
    %v418 = vpack.c.b16 %v409, %v408
    %v419 = vpack.c.b16 %v411, %v410
    %428 = vmatpush.bf16.msra.mxu0 %v419
    %429 = vmatpush.bf16.msra.mxu0 %v418
    %430 = vmatpush.bf16.msra.mxu0 %v417
    %431 = vmatpush.bf16.msra.mxu0 %v416
    %432 = vmatpush.bf16.msra.mxu0 %v415
    %433 = vmatpush.bf16.msra.mxu0 %v414
    %434 = vmatpush.bf16.msra.mxu0 %v413
    %435 = vmatpush.bf16.msra.mxu0 %v412
    %436 = vmatmul.bf16.gmra.mxu0 %v376
    %v437 = vpop.f32.mrf.mxu0
    %v438 = vadd.f32 %v378, %v437
    %v439 = vpop.f32.mrf.mxu0
    %440 = vdwg.mxu0
    %441 = vst [vmem:[#allocation11] sm:$0xff] %v438
    // Predicated region
    $region58: #{tpu_custom_call.1} parent=1 // pred_check
      _
    $region59: #{tpu_custom_call.1} parent=1 // pred_check_branch
      %443 = sbr.rel (0) target = $region61
    $region60: #{tpu_custom_call.1} parent=1 // pred_region
      %445 = vsyncadd [#allocation4], 0
      %s447 = sshll.u32 [#allocation11], 4
      %s448 = int_to_ptr.vmem [resolvable:$true] %s447
      %s449 = sshll.u32 %s9, 4
      %s450 = int_to_ptr.hbm [resolvable:$true] %s449
      %452 = dma.vmem_to_hbm [thread:$0]  %s448, 128, %s450, [#allocation4]
    $region61: #{tpu_custom_call.1} parent=1 // pred_fallthru
      _
    // Predicated region
    $region62: #{tpu_custom_call.1} parent=1 // pred_check
      _
    $region63: #{tpu_custom_call.1} parent=1 // pred_check_branch
      %454 = sbr.rel (0) target = $region65
    $region64: #{tpu_custom_call.1} parent=1 // pred_region
      %456 = dma.done [#allocation4], 128
    $region65: #{tpu_custom_call.1} parent=1 // pred_fallthru
      _
    %457 = vsyncpa [#allocation3], 1
    %458 = vsyncpa [#allocation6], 1
    %459 = vsyncpa [#allocation9], 1
    %460 = vsyncpa [#allocation4], 1

</llo_original>
